<compile_context>
chip_gen: v6e
topology: v6e:2x2x1
jax: 0.10.0
libtpu: 0.0.40
codegen_flags: <defaults>
</compile_context>

<pallas_src>
import functools
import numpy as np
import jax
import jax.numpy as jnp
from jax.experimental import pallas as pl
from jax.experimental.pallas import tpu as pltpu


# ----------------------------- Pallas kernel ------------------------------ #
def _rin_kernel(xT_ref, wg_ref, bg_ref, bnh_ref, wout_ref, bout_ref, ct_ref,
                out_ref):
    """Transposed (batch-on-lanes) GRU step (h0=0) + output linear + fused
    softplus / transition-mask / row-sum-to-diagonal epilogue."""
    H = bnh_ref.shape[0]

    xT = xT_ref[...]                                            # [D, TB]

    # One fused gate matmul; gates stacked on the sublane axis -> [3H, TB].
    # Fused bias column bg = [b_ir+b_hr ; b_iz+b_hz ; b_in] broadcasts along
    # the lane (batch) axis.
    g = jnp.dot(wg_ref[...], xT,
                preferred_element_type=jnp.float32) + bg_ref[...]
    r = jax.nn.sigmoid(g[:H, :])                                # 8-aligned
    z = jax.nn.sigmoid(g[H:2 * H, :])                           # sublane
    n = jnp.tanh(g[2 * H:, :] + r * bnh_ref[...])               # slices
    h = (1.0 - z) * n                                           # [H, TB]

    # Output layer: W_out @ h + b_out -> [S*S, TB]
    a = jnp.dot(wout_ref[...], h,
                preferred_element_type=jnp.float32) + bout_ref[...]

    # Numerically stable softplus (single exp + log1p on the EUP).
    sp = jnp.maximum(a, 0.0) + jnp.log1p(jnp.exp(-jnp.abs(a)))

    # Fused mask + row-sum-to-diagonal in one tiny MXU pass:
    #   out = C^T @ softplus(a),   C = diag(mask_flat) @ (I - G_rowsum @ Dsel)
    out_ref[...] = jnp.dot(ct_ref[...], sp,
                           preferred_element_type=jnp.float32)


# --------------------------- one-time host prep ---------------------------- #
def prepare_rin_params(params, num_states, state_transitions):
    """One-time prep: fused gate weights/biases, transposed mask/diag C."""
    S = num_states
    H = params["b_hh"].shape[0] // 3
    f32 = jnp.float32

    w_gates = jnp.asarray(params["w_ih"], f32)                  # [3H, D]

    b_ih = np.asarray(params["b_ih"], np.float32)
    b_hh = np.asarray(params["b_hh"], np.float32)
    b_g = b_ih.copy()
    b_g[:2 * H] += b_hh[:2 * H]                                 # fuse r,z biases
    b_g = jnp.asarray(b_g.reshape(3 * H, 1), f32)               # [3H, 1] column
    b_nh = jnp.asarray(b_hh[2 * H:].reshape(H, 1), f32)         # [H, 1], scaled by r

    w_out = jnp.asarray(params["w_out"], f32)                   # [S*S, H]
    b_out = jnp.asarray(params["b_out"], f32).reshape(S * S, 1)

    # Fused post-softplus constant (row-major):  out_row = softplus(a) @ C
    #   C = diag(mask_flat) @ (I_{S*S} - G_rowsum @ Dsel)
    # Transposed layout uses C^T:                out_col = C^T @ softplus(a)
    mask = np.zeros((S, S), dtype=np.float32)
    for frm, tos in state_transitions.items():
        for to in tos:
            mask[frm, to] = 1.0
    gsum = np.zeros((S * S, S), dtype=np.float32)
    dsel = np.zeros((S, S * S), dtype=np.float32)
    for i in range(S):
        gsum[i * S:(i + 1) * S, i] = 1.0
        dsel[i, i * S + i] = 1.0
    c = np.diag(mask.reshape(S * S)) @ (np.eye(S * S, dtype=np.float32)
                                        - gsum @ dsel)
    ct = jnp.asarray(c.T, f32)                                  # [S*S, S*S]

    return dict(w_gates=w_gates, b_g=b_g, b_nh=b_nh,
                w_out=w_out, b_out=b_out, ct=ct,
                num_states=S, hidden=H)


# --------------------------- batch tile selection -------------------------- #
def _choose_block_b(B, max_tile=4096):
    """Even split of B into the minimal number of 128-aligned lane tiles
    (capped at `max_tile`), using >= 2 tiles when possible (v7x: 2 TCs)."""
    lanes = -(-B // 128)                              # 128-row lane groups
    n_tiles = max(-(-B // max_tile), min(2, lanes))   # >=2 when B >= 2 groups
    return (-(-lanes // n_tiles)) * 128               # multiple of 128


# ------------------------------ jitted forward ------------------------------ #
@functools.partial(jax.jit, static_argnames=("num_states", "block_b"))
def _rin_forward(x, w_gates, b_g, b_nh, w_out, b_out, ct, *,
                 num_states, block_b):
    x = x.astype(jnp.float32)
    B, D = x.shape
    S = num_states
    SS = S * S
    H3 = w_gates.shape[0]
    H = H3 // 3
    TB = block_b
    Bp = pl.cdiv(B, TB) * TB

    xT = x.T                                                    # [D, B]
    if Bp != B:
        xT = jnp.pad(xT, ((0, 0), (0, Bp - B)))

    cost = pl.CostEstimate(
        flops=2 * Bp * (H3 * D + SS * H + SS * SS),
        transcendentals=Bp * (H3 + SS),
        bytes_accessed=4 * (Bp * (D + SS)
                            + H3 * D + H3 + H + SS * H + SS + SS * SS),
    )

    out_t = pl.pallas_call(
        _rin_kernel,
        out_shape=jax.ShapeDtypeStruct((SS, Bp), jnp.float32),
        grid=(Bp // TB,),
        in_specs=[
            pl.BlockSpec((D, TB), lambda i: (0, i)),      # x^T (batch on lanes)
            pl.BlockSpec((H3, D), lambda i: (0, 0)),      # W_ih fused  (resident)
            pl.BlockSpec((H3, 1), lambda i: (0, 0)),      # fused gate bias column
            pl.BlockSpec((H, 1), lambda i: (0, 0)),       # b_hn column (scaled by r)
            pl.BlockSpec((SS, H), lambda i: (0, 0)),      # W_out
            pl.BlockSpec((SS, 1), lambda i: (0, 0)),      # b_out column
            pl.BlockSpec((SS, SS), lambda i: (0, 0)),     # fused mask/diag C^T
        ],
        out_specs=pl.BlockSpec((SS, TB), lambda i: (0, i)),
        compiler_params=pltpu.CompilerParams(
            dimension_semantics=("parallel",)),
        cost_estimate=cost,
    )(xT, w_gates, b_g, b_nh, w_out, b_out, ct)

    return out_t[:, :B].T.reshape(B, S, S)


def recurrent_intensity_forward(x, prep, block_b=None):
    """User-facing wrapper; all weight/constant prep was done once in `prep`."""
    if block_b is None:
        block_b = _choose_block_b(x.shape[0])
    return _rin_forward(x, prep["w_gates"], prep["b_g"], prep["b_nh"],
                        prep["w_out"], prep["b_out"], prep["ct"],
                        num_states=prep["num_states"], block_b=block_b)


# --------------------------- pure-JAX reference ---------------------------- #
def reference_forward(x, params, num_states, state_transitions):
    B = x.shape[0]
    S = num_states
    H = params["b_hh"].shape[0] // 3
    gates = x @ params["w_ih"].T + params["b_ih"]
    bhh = params["b_hh"]
    r = jax.nn.sigmoid(gates[:, :H] + bhh[:H])
    z = jax.nn.sigmoid(gates[:, H:2 * H] + bhh[H:2 * H])
    n = jnp.tanh(gates[:, 2 * H:] + r * bhh[2 * H:])
    h = (1.0 - z) * n
    a = (h @ params["w_out"].T + params["b_out"]).reshape(B, S, S)
    mask = np.zeros((S, S), dtype=np.float32)
    for frm, tos in state_transitions.items():
        for to in tos:
            mask[frm, to] = 1.0
    a = jax.nn.softplus(a) * jnp.asarray(mask)
    a_diag = -jnp.sum(a, axis=2)
    return a + a_diag[..., None] * jnp.eye(S, dtype=a.dtype)


# --------------------------------- main ------------------------------------ #
if __name__ == "__main__":
    B, INPUT_DIM, HIDDEN_DIM, NUM_STATES = 8, 16, 32, 4
    STATE_TRANSITIONS = {0: [1, 2], 1: [2, 3], 2: [3], 3: []}

    key = jax.random.PRNGKey(0)
    kx, k1, k2, k3, k4, k5 = jax.random.split(key, 6)

    # Deterministic parameter init (PyTorch-style uniform(-1/sqrt(H), 1/sqrt(H)))
    bound = 1.0 / np.sqrt(HIDDEN_DIM)
    params = {
        "w_ih":  jax.random.uniform(k1, (3 * HIDDEN_DIM, INPUT_DIM),
                                    minval=-bound, maxval=bound, dtype=jnp.float32),
        "b_ih":  jax.random.uniform(k2, (3 * HIDDEN_DIM,),
                                    minval=-bound, maxval=bound, dtype=jnp.float32),
        "b_hh":  jax.random.uniform(k3, (3 * HIDDEN_DIM,),
                                    minval=-bound, maxval=bound, dtype=jnp.float32),
        "w_out": jax.random.uniform(k4, (NUM_STATES * NUM_STATES, HIDDEN_DIM),
                                    minval=-bound, maxval=bound, dtype=jnp.float32),
        "b_out": jax.random.uniform(k5, (NUM_STATES * NUM_STATES,),
                                    minval=-bound, maxval=bound, dtype=jnp.float32),
    }

    x = jax.random.normal(kx, (B, INPUT_DIM), dtype=jnp.float32)

    prep = prepare_rin_params(params, NUM_STATES, STATE_TRANSITIONS)  # once
    out = recurrent_intensity_forward(x, prep)
    out = jax.block_until_ready(out)

    ref = reference_forward(x, params, NUM_STATES, STATE_TRANSITIONS)
    assert out.shape == (B, NUM_STATES, NUM_STATES)
    np.testing.assert_allclose(np.asarray(out), np.asarray(ref),
                               rtol=1e-4, atol=1e-4)
    print("KERNEL_OK")
</pallas_src>

<mosaic_0001>
module attributes {stable_mosaic.version = 11 : i64} {
  func.func @_rin_kernel(%arg0: i32, %arg1: memref<16x128xf32, #tpu.memory_space<vmem>>, %arg2: memref<96x16xf32, #tpu.memory_space<vmem>>, %arg3: memref<96x1xf32, #tpu.memory_space<vmem>>, %arg4: memref<32x1xf32, #tpu.memory_space<vmem>>, %arg5: memref<16x32xf32, #tpu.memory_space<vmem>>, %arg6: memref<16x1xf32, #tpu.memory_space<vmem>>, %arg7: memref<16x16xf32, #tpu.memory_space<vmem>>, %arg8: memref<16x128xf32, #tpu.memory_space<vmem>>) attributes {dimension_semantics = [#tpu.dimension_semantics<parallel>], iteration_bounds = array<i64: 1>, scalar_prefetch = 0 : i64, scratch_operands = 0 : i64, tpu.core_type = #tpu.core_type<tc>, window_params = [{transform_indices = @transform_0, window_bounds = array<i64: 16, 128>}, {pipeline_mode = #tpu.pipeline_mode<synchronous>, transform_indices = @transform_1, window_bounds = array<i64: 96, 16>}, {pipeline_mode = #tpu.pipeline_mode<synchronous>, transform_indices = @transform_2, window_bounds = array<i64: 96, 1>}, {pipeline_mode = #tpu.pipeline_mode<synchronous>, transform_indices = @transform_3, window_bounds = array<i64: 32, 1>}, {pipeline_mode = #tpu.pipeline_mode<synchronous>, transform_indices = @transform_4, window_bounds = array<i64: 16, 32>}, {pipeline_mode = #tpu.pipeline_mode<synchronous>, transform_indices = @transform_5, window_bounds = array<i64: 16, 1>}, {pipeline_mode = #tpu.pipeline_mode<synchronous>, transform_indices = @transform_6, window_bounds = array<i64: 16, 16>}, {transform_indices = @transform_7, window_bounds = array<i64: 16, 128>}]} {
    %c0 = arith.constant 0 : index
    %c0_0 = arith.constant 0 : index
    %0 = vector.load %arg1[%c0, %c0_0] : memref<16x128xf32, #tpu.memory_space<vmem>>, vector<16x128xf32>
    %c0_1 = arith.constant 0 : index
    %c0_2 = arith.constant 0 : index
    %1 = vector.load %arg2[%c0_1, %c0_2] : memref<96x16xf32, #tpu.memory_space<vmem>>, vector<96x16xf32>
    %cst = arith.constant dense<0.000000e+00> : vector<96x128xf32>
    %2 = tpu.matmul %1, %0, %cst {dimension_numbers = #tpu.dot_dimension_numbers<[1], [0], [0], [1], [0, 0, 1, 1], [], []>} : vector<96x16xf32>, vector<16x128xf32>, vector<96x128xf32> -> vector<96x128xf32>
    %c0_3 = arith.constant 0 : index
    %c0_4 = arith.constant 0 : index
    %3 = vector.load %arg3[%c0_3, %c0_4] : memref<96x1xf32, #tpu.memory_space<vmem>>, vector<96x1xf32>
    %4 = vector.broadcast %3 : vector<96x1xf32> to vector<96x128xf32>
    %5 = arith.addf %2, %4 : vector<96x128xf32>
    %6 = vector.extract_strided_slice %5 {offsets = [0, 0], sizes = [32, 128], strides = [1, 1]} : vector<96x128xf32> to vector<32x128xf32>
    %7 = arith.negf %6 : vector<32x128xf32>
    %8 = math.exp %7 : vector<32x128xf32>
    %cst_5 = arith.constant 1.000000e+00 : f32
    %9 = vector.broadcast %cst_5 : f32 to vector<32x128xf32>
    %10 = arith.addf %9, %8 : vector<32x128xf32>
    %11 = arith.divf %9, %10 : vector<32x128xf32>
    %12 = vector.extract_strided_slice %5 {offsets = [32, 0], sizes = [32, 128], strides = [1, 1]} : vector<96x128xf32> to vector<32x128xf32>
    %13 = arith.negf %12 : vector<32x128xf32>
    %14 = math.exp %13 : vector<32x128xf32>
    %cst_6 = arith.constant 1.000000e+00 : f32
    %15 = vector.broadcast %cst_6 : f32 to vector<32x128xf32>
    %16 = arith.addf %15, %14 : vector<32x128xf32>
    %17 = arith.divf %15, %16 : vector<32x128xf32>
    %18 = vector.extract_strided_slice %5 {offsets = [64, 0], sizes = [32, 128], strides = [1, 1]} : vector<96x128xf32> to vector<32x128xf32>
    %c0_7 = arith.constant 0 : index
    %c0_8 = arith.constant 0 : index
    %19 = vector.load %arg4[%c0_7, %c0_8] : memref<32x1xf32, #tpu.memory_space<vmem>>, vector<32x1xf32>
    %20 = vector.broadcast %19 : vector<32x1xf32> to vector<32x128xf32>
    %21 = arith.mulf %11, %20 : vector<32x128xf32>
    %22 = arith.addf %18, %21 : vector<32x128xf32>
    %23 = math.tanh %22 : vector<32x128xf32>
    %cst_9 = arith.constant 1.000000e+00 : f32
    %24 = vector.broadcast %cst_9 : f32 to vector<32x128xf32>
    %25 = arith.subf %24, %17 : vector<32x128xf32>
    %26 = arith.mulf %25, %23 : vector<32x128xf32>
    %c0_10 = arith.constant 0 : index
    %c0_11 = arith.constant 0 : index
    %27 = vector.load %arg5[%c0_10, %c0_11] : memref<16x32xf32, #tpu.memory_space<vmem>>, vector<16x32xf32>
    %cst_12 = arith.constant dense<0.000000e+00> : vector<16x128xf32>
    %28 = tpu.matmul %27, %26, %cst_12 {dimension_numbers = #tpu.dot_dimension_numbers<[1], [0], [0], [1], [0, 0, 1, 1], [], []>} : vector<16x32xf32>, vector<32x128xf32>, vector<16x128xf32> -> vector<16x128xf32>
    %c0_13 = arith.constant 0 : index
    %c0_14 = arith.constant 0 : index
    %29 = vector.load %arg6[%c0_13, %c0_14] : memref<16x1xf32, #tpu.memory_space<vmem>>, vector<16x1xf32>
    %30 = vector.broadcast %29 : vector<16x1xf32> to vector<16x128xf32>
    %31 = arith.addf %28, %30 : vector<16x128xf32>
    %cst_15 = arith.constant 0.000000e+00 : f32
    %32 = vector.broadcast %cst_15 : f32 to vector<16x128xf32>
    %33 = arith.maximumf %31, %32 : vector<16x128xf32>
    %34 = math.absf %31 : vector<16x128xf32>
    %cst_16 = arith.constant 0.000000e+00 : f32
    %35 = vector.broadcast %cst_16 : f32 to vector<16x128xf32>
    %36 = arith.subf %35, %34 : vector<16x128xf32>
    %37 = math.exp %36 : vector<16x128xf32>
    %38 = math.log1p %37 : vector<16x128xf32>
    %39 = arith.addf %33, %38 : vector<16x128xf32>
    %c0_17 = arith.constant 0 : index
    %c0_18 = arith.constant 0 : index
    %40 = vector.load %arg7[%c0_17, %c0_18] : memref<16x16xf32, #tpu.memory_space<vmem>>, vector<16x16xf32>
    %cst_19 = arith.constant dense<0.000000e+00> : vector<16x128xf32>
    %41 = tpu.matmul %40, %39, %cst_19 {dimension_numbers = #tpu.dot_dimension_numbers<[1], [0], [0], [1], [0, 0, 1, 1], [], []>} : vector<16x16xf32>, vector<16x128xf32>, vector<16x128xf32> -> vector<16x128xf32>
    %c0_20 = arith.constant 0 : index
    %c0_21 = arith.constant 0 : index
    %42 = vector.load %arg8[%c0_20, %c0_21] : memref<16x128xf32, #tpu.memory_space<vmem>>, vector<16x128xf32>
    tpu.vector_store %arg8[%c0_20, %c0_21], %41 {strides = array<i32>} : memref<16x128xf32, #tpu.memory_space<vmem>>, vector<16x128xf32>,
    return
  }
  func.func @transform_0(%arg0: i32) -> (i32, i32) {
    %c0_i32 = arith.constant 0 : i32
    %c0_i32_0 = arith.constant 0 : i32
    return %c0_i32, %arg0 : i32, i32
  }
  func.func @transform_1(%arg0: i32) -> (i32, i32) {
    %c0_i32 = arith.constant 0 : i32
    %c0_i32_0 = arith.constant 0 : i32
    %c0_i32_1 = arith.constant 0 : i32
    return %c0_i32, %c0_i32_0 : i32, i32
  }
  func.func @transform_2(%arg0: i32) -> (i32, i32) {
    %c0_i32 = arith.constant 0 : i32
    %c0_i32_0 = arith.constant 0 : i32
    %c0_i32_1 = arith.constant 0 : i32
    return %c0_i32, %c0_i32_0 : i32, i32
  }
  func.func @transform_3(%arg0: i32) -> (i32, i32) {
    %c0_i32 = arith.constant 0 : i32
    %c0_i32_0 = arith.constant 0 : i32
    %c0_i32_1 = arith.constant 0 : i32
    return %c0_i32, %c0_i32_0 : i32, i32
  }
  func.func @transform_4(%arg0: i32) -> (i32, i32) {
    %c0_i32 = arith.constant 0 : i32
    %c0_i32_0 = arith.constant 0 : i32
    %c0_i32_1 = arith.constant 0 : i32
    return %c0_i32, %c0_i32_0 : i32, i32
  }
  func.func @transform_5(%arg0: i32) -> (i32, i32) {
    %c0_i32 = arith.constant 0 : i32
    %c0_i32_0 = arith.constant 0 : i32
    %c0_i32_1 = arith.constant 0 : i32
    return %c0_i32, %c0_i32_0 : i32, i32
  }
  func.func @transform_6(%arg0: i32) -> (i32, i32) {
    %c0_i32 = arith.constant 0 : i32
    %c0_i32_0 = arith.constant 0 : i32
    %c0_i32_1 = arith.constant 0 : i32
    return %c0_i32, %c0_i32_0 : i32, i32
  }
  func.func @transform_7(%arg0: i32) -> (i32, i32) {
    %c0_i32 = arith.constant 0 : i32
    %c0_i32_0 = arith.constant 0 : i32
    return %c0_i32, %arg0 : i32, i32
  }
}

</mosaic_0001>

<llo_original>
// kernel: _rin_forward.1
$region0: #{_rin_forward.1}
  #allocation0 [shape = 'u32[]', space=smem, size = 0x4, offset = 0x4, fixed_abs, tag = 'smem constant byte address 0x4 - core index']
  #allocation1 [shape = 'u32[144,128]{1,0:T(1,128)}', space=vmem, size = 0x12000, scoped, tag = 'internal scratch']
  %s0 = inlined_call_operand.vmem [shape: f32[16,128], index: 0, kind: input, shape index: {}]
  %s1 = inlined_call_operand.vmem [shape: f32[96,16], index: 1, kind: input, shape index: {}]
  %s2 = inlined_call_operand.vmem [shape: f32[96,1], index: 2, kind: input, shape index: {}]
  %s3 = inlined_call_operand.vmem [shape: f32[32,1], index: 3, kind: input, shape index: {}]
  %s4 = inlined_call_operand.vmem [shape: f32[16,32], index: 4, kind: input, shape index: {}]
  %s5 = inlined_call_operand.vmem [shape: f32[16,1], index: 5, kind: input, shape index: {}]
  %s6 = inlined_call_operand.vmem [shape: f32[16,16], index: 6, kind: input, shape index: {}]
  %s7 = inlined_call_operand.hbm [shape: f32[16,128], index: 7, kind: output, shape index: {}]
  %s8 = sld [smem:[#allocation0]]
  $region38: #{_rin_forward.1} parent=0
    _
  %s10 = ssub.s32 1, %s8
  %s11 = scalar_select 0, %s10, %s8
  $region1: #{_rin_forward.1} parent=0
    #allocation2 [shape = 'u8[8192]{0}', space=vmem, size = 0x2000, scoped, tag = 'output window, operand 0, single buffered']
    #allocation3 [shape = 's32[1]{0}', space=sflag, size = 0x4, scoped, tag = 'scoped memory for _rin_forward.1']
    %12 = vsyncpa [#allocation3], 0
    // Predicated region
    $region2: #{_rin_forward.1} parent=1 // pred_check
      _
    $region3: #{_rin_forward.1} parent=1 // pred_check_branch
      %14 = sbr.rel (0) target = $region5
    $region4: #{_rin_forward.1} parent=1 // pred_region
      _
    $region5: #{_rin_forward.1} parent=1 // pred_fallthru
      _
    // Predicated region
    $region6: #{_rin_forward.1} parent=1 // pred_check
      _
    $region7: #{_rin_forward.1} parent=1 // pred_check_branch
      %16 = sbr.rel (0) target = $region9
    $region8: #{_rin_forward.1} parent=1 // pred_region
      _
    $region9: #{_rin_forward.1} parent=1 // pred_fallthru
      _
    // Predicated region
    $region10: #{_rin_forward.1} parent=1 // pred_check
      _
    $region11: #{_rin_forward.1} parent=1 // pred_check_branch
      %18 = sbr.rel (0) target = $region13
    $region12: #{_rin_forward.1} parent=1 // pred_region
      _
    $region13: #{_rin_forward.1} parent=1 // pred_fallthru
      _
    // Predicated region
    $region14: #{_rin_forward.1} parent=1 // pred_check
      _
    $region15: #{_rin_forward.1} parent=1 // pred_check_branch
      %20 = sbr.rel (0) target = $region17
    $region16: #{_rin_forward.1} parent=1 // pred_region
      _
    $region17: #{_rin_forward.1} parent=1 // pred_fallthru
      _
    // Predicated region
    $region18: #{_rin_forward.1} parent=1 // pred_check
      _
    $region19: #{_rin_forward.1} parent=1 // pred_check_branch
      %22 = sbr.rel (0) target = $region21
    $region20: #{_rin_forward.1} parent=1 // pred_region
      _
    $region21: #{_rin_forward.1} parent=1 // pred_fallthru
      _
    // Predicated region
    $region22: #{_rin_forward.1} parent=1 // pred_check
      _
    $region23: #{_rin_forward.1} parent=1 // pred_check_branch
      %24 = sbr.rel (0) target = $region25
    $region24: #{_rin_forward.1} parent=1 // pred_region
      _
    $region25: #{_rin_forward.1} parent=1 // pred_fallthru
      _
    // Predicated region
    $region26: #{_rin_forward.1} parent=1 // pred_check
      _
    $region27: #{_rin_forward.1} parent=1 // pred_check_branch
      %26 = sbr.rel (0) target = $region29
    $region28: #{_rin_forward.1} parent=1 // pred_region
      _
    $region29: #{_rin_forward.1} parent=1 // pred_fallthru
      _
    %v27 = vld [vmem:[%s0] sm:$0xff]
    %v28 = vld [vmem:[%s0 + $0x8] sm:$0xff]
    %v29 = vld [vmem:[%s1] sm:$0xff]
    %v30 = vld [vmem:[%s1 + $0x8] sm:$0xff]
    %v31 = vld [vmem:[%s1 + $0x10] sm:$0xff]
    %v32 = vld [vmem:[%s1 + $0x18] sm:$0xff]
    %v33 = vld [vmem:[%s1 + $0x20] sm:$0xff]
    %v34 = vld [vmem:[%s1 + $0x28] sm:$0xff]
    %v35 = vld [vmem:[%s1 + $0x30] sm:$0xff]
    %v36 = vld [vmem:[%s1 + $0x38] sm:$0xff]
    %v37 = vld [vmem:[%s1 + $0x40] sm:$0xff]
    %v38 = vld [vmem:[%s1 + $0x48] sm:$0xff]
    %v39 = vld [vmem:[%s1 + $0x50] sm:$0xff]
    %v40 = vld [vmem:[%s1 + $0x58] sm:$0xff]
    %v41 = vld [vmem:[%s2] sm:$0xff]
    %v42 = vld [vmem:[%s2 + $0x8] sm:$0xff]
    %v43 = vld [vmem:[%s2 + $0x10] sm:$0xff]
    %v44 = vld [vmem:[%s2 + $0x18] sm:$0xff]
    %v45 = vld [vmem:[%s2 + $0x20] sm:$0xff]
    %v46 = vld [vmem:[%s2 + $0x28] sm:$0xff]
    %v47 = vld [vmem:[%s2 + $0x30] sm:$0xff]
    %v48 = vld [vmem:[%s2 + $0x38] sm:$0xff]
    %v49 = vld [vmem:[%s2 + $0x40] sm:$0xff]
    %v50 = vld [vmem:[%s2 + $0x48] sm:$0xff]
    %v51 = vld [vmem:[%s2 + $0x50] sm:$0xff]
    %v52 = vld [vmem:[%s2 + $0x58] sm:$0xff]
    %54 = vset.pattern.permute.xlu0 0
    %55 = vperm.xlu0 %54, %v41
    %v56 = vpop.permute.xlu0 %55
    %59 = vset.pattern.permute.xlu0 0
    %60 = vperm.xlu0 %59, %v42
    %v61 = vpop.permute.xlu0 %60
    %64 = vset.pattern.permute.xlu0 0
    %65 = vperm.xlu0 %64, %v43
    %v66 = vpop.permute.xlu0 %65
    %69 = vset.pattern.permute.xlu0 0
    %70 = vperm.xlu0 %69, %v44
    %v71 = vpop.permute.xlu0 %70
    %74 = vset.pattern.permute.xlu0 0
    %75 = vperm.xlu0 %74, %v45
    %v76 = vpop.permute.xlu0 %75
    %79 = vset.pattern.permute.xlu0 0
    %80 = vperm.xlu0 %79, %v46
    %v81 = vpop.permute.xlu0 %80
    %84 = vset.pattern.permute.xlu0 0
    %85 = vperm.xlu0 %84, %v47
    %v86 = vpop.permute.xlu0 %85
    %89 = vset.pattern.permute.xlu0 0
    %90 = vperm.xlu0 %89, %v48
    %v91 = vpop.permute.xlu0 %90
    %94 = vset.pattern.permute.xlu0 0
    %95 = vperm.xlu0 %94, %v49
    %v96 = vpop.permute.xlu0 %95
    %99 = vset.pattern.permute.xlu0 0
    %100 = vperm.xlu0 %99, %v50
    %v101 = vpop.permute.xlu0 %100
    %104 = vset.pattern.permute.xlu0 0
    %105 = vperm.xlu0 %104, %v51
    %v106 = vpop.permute.xlu0 %105
    %109 = vset.pattern.permute.xlu0 0
    %110 = vperm.xlu0 %109, %v52
    %v111 = vpop.permute.xlu0 %110
    %vm113 = vcmask 130048
    %v115 = vsel %vm113, %v29, 0
    %v118 = vsel %vm113, %v30, 0
    %v121 = vsel %vm113, %v31, 0
    %v124 = vsel %vm113, %v32, 0
    %v127 = vsel %vm113, %v33, 0
    %v130 = vsel %vm113, %v34, 0
    %v133 = vsel %vm113, %v35, 0
    %v136 = vsel %vm113, %v36, 0
    %v139 = vsel %vm113, %v37, 0
    %v142 = vsel %vm113, %v38, 0
    %v145 = vsel %vm113, %v39, 0
    %v148 = vsel %vm113, %v40, 0
    %150 = vmatprep.subr.mxu0 0.0
    %151 = vmatpush1.msra.mxu0 0.0
    %152 = vmatprep.subr.mxu0 0.0
    %153 = vmatpush1.msra.mxu0 0.0
    %154 = vmatprep.subr.mxu0 0.0
    %155 = vmatpush1.msra.mxu0 0.0
    %156 = vmatprep.subr.mxu0 0.0
    %157 = vmatpush1.msra.mxu0 0.0
    %158 = vmatprep.subr.mxu0 0.0
    %159 = vmatpush1.msra.mxu0 0.0
    %160 = vmatprep.subr.mxu0 0.0
    %161 = vmatpush1.msra.mxu0 0.0
    %162 = vmatprep.subr.mxu0 0.0
    %163 = vmatpush1.msra.mxu0 0.0
    %164 = vmatprep.subr.mxu0 0.0
    %165 = vmatpush1.msra.mxu0 0.0
    %166 = vmatprep.subr.mxu0 0.0
    %167 = vmatpush1.msra.mxu0 0.0
    %168 = vmatprep.subr.mxu0 0.0
    %169 = vmatpush1.msra.mxu0 0.0
    %170 = vmatprep.subr.mxu0 0.0
    %171 = vmatpush1.msra.mxu0 0.0
    %172 = vmatprep.subr.mxu0 0.0
    %173 = vmatpush1.msra.mxu0 0.0
    %174 = vmatprep.subr.mxu0 0.0
    %175 = vmatpush1.msra.mxu0 0.0
    %176 = vmatprep.subr.mxu0 0.0
    %177 = vmatpush1.msra.mxu0 0.0
    %178 = vmatprep.subr.mxu0 0.0
    %179 = vmatpush1.msra.mxu0 %v28
    %180 = vmatprep.subr.mxu0 0.0
    %181 = vmatpush1.msra.mxu0 %v27
    %182 = vmatprep.subr.mxu0 0.0
    %183 = vmatpush2.msra.mxu0 0.0
    %184 = vmatprep.subr.mxu0 0.0
    %185 = vmatpush2.msra.mxu0 0.0
    %186 = vmatprep.subr.mxu0 0.0
    %187 = vmatpush2.msra.mxu0 0.0
    %188 = vmatprep.subr.mxu0 0.0
    %189 = vmatpush2.msra.mxu0 0.0
    %190 = vmatprep.subr.mxu0 0.0
    %191 = vmatpush2.msra.mxu0 0.0
    %192 = vmatprep.subr.mxu0 0.0
    %193 = vmatpush2.msra.mxu0 0.0
    %194 = vmatprep.subr.mxu0 0.0
    %195 = vmatpush2.msra.mxu0 0.0
    %196 = vmatprep.subr.mxu0 0.0
    %197 = vmatpush2.msra.mxu0 0.0
    %198 = vmatprep.subr.mxu0 0.0
    %199 = vmatpush2.msra.mxu0 0.0
    %200 = vmatprep.subr.mxu0 0.0
    %201 = vmatpush2.msra.mxu0 0.0
    %202 = vmatprep.subr.mxu0 0.0
    %203 = vmatpush2.msra.mxu0 0.0
    %204 = vmatprep.subr.mxu0 0.0
    %205 = vmatpush2.msra.mxu0 0.0
    %206 = vmatprep.subr.mxu0 0.0
    %207 = vmatpush2.msra.mxu0 0.0
    %208 = vmatprep.subr.mxu0 0.0
    %209 = vmatpush2.msra.mxu0 0.0
    %210 = vmatprep.subr.mxu0 0.0
    %211 = vmatpush2.msra.mxu0 0.0
    %212 = vmatprep.subr.mxu0 0.0
    %213 = vmatpush2.msra.mxu0 0.0
    %214 = vmatprep.mubr.f32.mxu0 0.0
    %215 = vmatmul.mubr.f32.gmra.mxu0 %v115
    %v216 = vpop.f32.mrf.mxu0
    %v217 = vadd.f32 %v56, %v216
    %v218 = vpop.f32.mrf.mxu0
    %219 = vmatprep.mubr.f32.mxu0 0.0
    %220 = vmatmul.mubr.f32.gmra.mxu0 %v118
    %v221 = vpop.f32.mrf.mxu0
    %v222 = vadd.f32 %v61, %v221
    %v223 = vpop.f32.mrf.mxu0
    %224 = vmatprep.mubr.f32.mxu0 0.0
    %225 = vmatmul.mubr.f32.gmra.mxu0 %v121
    %v226 = vpop.f32.mrf.mxu0
    %v227 = vadd.f32 %v66, %v226
    %v228 = vpop.f32.mrf.mxu0
    %229 = vmatprep.mubr.f32.mxu0 0.0
    %230 = vmatmul.mubr.f32.gmra.mxu0 %v124
    %v231 = vpop.f32.mrf.mxu0
    %v232 = vadd.f32 %v71, %v231
    %v233 = vpop.f32.mrf.mxu0
    %234 = vmatprep.mubr.f32.mxu0 0.0
    %235 = vmatmul.mubr.f32.gmra.mxu0 %v127
    %v236 = vpop.f32.mrf.mxu0
    %v237 = vadd.f32 %v76, %v236
    %v238 = vpop.f32.mrf.mxu0
    %239 = vmatprep.mubr.f32.mxu0 0.0
    %240 = vmatmul.mubr.f32.gmra.mxu0 %v130
    %v241 = vpop.f32.mrf.mxu0
    %v242 = vadd.f32 %v81, %v241
    %v243 = vpop.f32.mrf.mxu0
    %244 = vmatprep.mubr.f32.mxu0 0.0
    %245 = vmatmul.mubr.f32.gmra.mxu0 %v133
    %v246 = vpop.f32.mrf.mxu0
    %v247 = vadd.f32 %v86, %v246
    %v248 = vpop.f32.mrf.mxu0
    %249 = vmatprep.mubr.f32.mxu0 0.0
    %250 = vmatmul.mubr.f32.gmra.mxu0 %v136
    %v251 = vpop.f32.mrf.mxu0
    %v252 = vadd.f32 %v91, %v251
    %v253 = vpop.f32.mrf.mxu0
    %254 = vmatprep.mubr.f32.mxu0 0.0
    %255 = vmatmul.mubr.f32.gmra.mxu0 %v139
    %v256 = vpop.f32.mrf.mxu0
    %v257 = vadd.f32 %v96, %v256
    %v258 = vpop.f32.mrf.mxu0
    %259 = vmatprep.mubr.f32.mxu0 0.0
    %260 = vmatmul.mubr.f32.gmra.mxu0 %v142
    %v261 = vpop.f32.mrf.mxu0
    %v262 = vadd.f32 %v101, %v261
    %v263 = vpop.f32.mrf.mxu0
    %264 = vmatprep.mubr.f32.mxu0 0.0
    %265 = vmatmul.mubr.f32.gmra.mxu0 %v145
    %v266 = vpop.f32.mrf.mxu0
    %v267 = vadd.f32 %v106, %v266
    %v268 = vpop.f32.mrf.mxu0
    %269 = vmatprep.mubr.f32.mxu0 0.0
    %270 = vmatmul.mubr.f32.gmra.mxu0 %v148
    %v271 = vpop.f32.mrf.mxu0
    %v272 = vadd.f32 %v111, %v271
    %v273 = vpop.f32.mrf.mxu0
    %274 = vdwg.mxu0
    %v275 = vxor.u32 %v217, 2147483648
    %v276 = vxor.u32 %v222, 2147483648
    %v277 = vxor.u32 %v227, 2147483648
    %v278 = vxor.u32 %v232, 2147483648
    %v279 = vmul.f32 %v275, 1.442695
    %v280 = vpow.pop %v279
    %v281 = vmul.f32 %v276, 1.442695
    %v282 = vpow.pop %v281
    %v283 = vmul.f32 %v277, 1.442695
    %v284 = vpow.pop %v283
    %v285 = vmul.f32 %v278, 1.442695
    %v286 = vpow.pop %v285
    %v287 = vadd.f32 %v280, 1.0
    %v288 = vadd.f32 %v282, 1.0
    %v289 = vadd.f32 %v284, 1.0
    %v290 = vadd.f32 %v286, 1.0
    %v291 = vrcp.pop %v287
    %v292 = vmul.f32 1.0, %v291
    %v293 = vrcp.pop %v288
    %v294 = vmul.f32 1.0, %v293
    %v295 = vrcp.pop %v289
    %v296 = vmul.f32 1.0, %v295
    %v297 = vrcp.pop %v290
    %v298 = vmul.f32 1.0, %v297
    %v299 = vxor.u32 %v237, 2147483648
    %v300 = vxor.u32 %v242, 2147483648
    %v301 = vxor.u32 %v247, 2147483648
    %v302 = vxor.u32 %v252, 2147483648
    %v303 = vmul.f32 %v299, 1.442695
    %v304 = vpow.pop %v303
    %v305 = vmul.f32 %v300, 1.442695
    %v306 = vpow.pop %v305
    %v307 = vmul.f32 %v301, 1.442695
    %v308 = vpow.pop %v307
    %v309 = vmul.f32 %v302, 1.442695
    %v310 = vpow.pop %v309
    %v311 = vadd.f32 %v304, 1.0
    %v312 = vadd.f32 %v306, 1.0
    %v313 = vadd.f32 %v308, 1.0
    %v314 = vadd.f32 %v310, 1.0
    %v315 = vrcp.pop %v311
    %v316 = vmul.f32 1.0, %v315
    %v317 = vrcp.pop %v312
    %v318 = vmul.f32 1.0, %v317
    %v319 = vrcp.pop %v313
    %v320 = vmul.f32 1.0, %v319
    %v321 = vrcp.pop %v314
    %v322 = vmul.f32 1.0, %v321
    %v323 = vld [vmem:[%s3] sm:$0xff]
    %v324 = vld [vmem:[%s3 + $0x8] sm:$0xff]
    %v325 = vld [vmem:[%s3 + $0x10] sm:$0xff]
    %v326 = vld [vmem:[%s3 + $0x18] sm:$0xff]
    %328 = vset.pattern.permute.xlu0 0
    %329 = vperm.xlu0 %328, %v323
    %v330 = vpop.permute.xlu0 %329
    %333 = vset.pattern.permute.xlu0 0
    %334 = vperm.xlu0 %333, %v324
    %v335 = vpop.permute.xlu0 %334
    %338 = vset.pattern.permute.xlu0 0
    %339 = vperm.xlu0 %338, %v325
    %v340 = vpop.permute.xlu0 %339
    %343 = vset.pattern.permute.xlu0 0
    %344 = vperm.xlu0 %343, %v326
    %v345 = vpop.permute.xlu0 %344
    %v347 = vmul.f32 %v292, %v330
    %v348 = vmul.f32 %v294, %v335
    %v349 = vmul.f32 %v296, %v340
    %v350 = vmul.f32 %v298, %v345
    %v351 = vadd.f32 %v257, %v347
    %v352 = vadd.f32 %v262, %v348
    %v353 = vadd.f32 %v267, %v349
    %v354 = vadd.f32 %v272, %v350
    %v355 = vtanh.pop %v351
    %v356 = vtanh.pop %v352
    %v357 = vtanh.pop %v353
    %v358 = vtanh.pop %v354
    %v359 = vsub.f32 1.0, %v316
    %v360 = vsub.f32 1.0, %v318
    %v361 = vsub.f32 1.0, %v320
    %v362 = vsub.f32 1.0, %v322
    %v363 = vmul.f32 %v359, %v355
    %v364 = vmul.f32 %v360, %v356
    %v365 = vmul.f32 %v361, %v357
    %v366 = vmul.f32 %v362, %v358
    %v367 = vld [vmem:[%s4] sm:$0xff]
    %v368 = vld [vmem:[%s4 + $0x8] sm:$0xff]
    %v369 = vld [vmem:[%s5] sm:$0xff]
    %v370 = vld [vmem:[%s5 + $0x8] sm:$0xff]
    %372 = vset.pattern.permute.xlu0 0
    %373 = vperm.xlu0 %372, %v369
    %v374 = vpop.permute.xlu0 %373
    %377 = vset.pattern.permute.xlu0 0
    %378 = vperm.xlu0 %377, %v370
    %v379 = vpop.permute.xlu0 %378
    %vm381 = vcmask 261120
    %v383 = vsel %vm381, %v367, 0
    %v386 = vsel %vm381, %v368, 0
    %388 = vmatprep.subr.mxu0 0.0
    %389 = vmatpush1.msra.mxu0 0.0
    %390 = vmatprep.subr.mxu0 0.0
    %391 = vmatpush1.msra.mxu0 0.0
    %392 = vmatprep.subr.mxu0 0.0
    %393 = vmatpush1.msra.mxu0 0.0
    %394 = vmatprep.subr.mxu0 0.0
    %395 = vmatpush1.msra.mxu0 0.0
    %396 = vmatprep.subr.mxu0 0.0
    %397 = vmatpush1.msra.mxu0 0.0
    %398 = vmatprep.subr.mxu0 0.0
    %399 = vmatpush1.msra.mxu0 0.0
    %400 = vmatprep.subr.mxu0 0.0
    %401 = vmatpush1.msra.mxu0 0.0
    %402 = vmatprep.subr.mxu0 0.0
    %403 = vmatpush1.msra.mxu0 0.0
    %404 = vmatprep.subr.mxu0 0.0
    %405 = vmatpush1.msra.mxu0 0.0
    %406 = vmatprep.subr.mxu0 0.0
    %407 = vmatpush1.msra.mxu0 0.0
    %408 = vmatprep.subr.mxu0 0.0
    %409 = vmatpush1.msra.mxu0 0.0
    %410 = vmatprep.subr.mxu0 0.0
    %411 = vmatpush1.msra.mxu0 0.0
    %412 = vmatprep.subr.mxu0 0.0
    %413 = vmatpush1.msra.mxu0 %v366
    %414 = vmatprep.subr.mxu0 0.0
    %415 = vmatpush1.msra.mxu0 %v365
    %416 = vmatprep.subr.mxu0 0.0
    %417 = vmatpush1.msra.mxu0 %v364
    %418 = vmatprep.subr.mxu0 0.0
    %419 = vmatpush1.msra.mxu0 %v363
    %420 = vmatprep.subr.mxu0 0.0
    %421 = vmatpush2.msra.mxu0 0.0
    %422 = vmatprep.subr.mxu0 0.0
    %423 = vmatpush2.msra.mxu0 0.0
    %424 = vmatprep.subr.mxu0 0.0
    %425 = vmatpush2.msra.mxu0 0.0
    %426 = vmatprep.subr.mxu0 0.0
    %427 = vmatpush2.msra.mxu0 0.0
    %428 = vmatprep.subr.mxu0 0.0
    %429 = vmatpush2.msra.mxu0 0.0
    %430 = vmatprep.subr.mxu0 0.0
    %431 = vmatpush2.msra.mxu0 0.0
    %432 = vmatprep.subr.mxu0 0.0
    %433 = vmatpush2.msra.mxu0 0.0
    %434 = vmatprep.subr.mxu0 0.0
    %435 = vmatpush2.msra.mxu0 0.0
    %436 = vmatprep.subr.mxu0 0.0
    %437 = vmatpush2.msra.mxu0 0.0
    %438 = vmatprep.subr.mxu0 0.0
    %439 = vmatpush2.msra.mxu0 0.0
    %440 = vmatprep.subr.mxu0 0.0
    %441 = vmatpush2.msra.mxu0 0.0
    %442 = vmatprep.subr.mxu0 0.0
    %443 = vmatpush2.msra.mxu0 0.0
    %444 = vmatprep.subr.mxu0 0.0
    %445 = vmatpush2.msra.mxu0 0.0
    %446 = vmatprep.subr.mxu0 0.0
    %447 = vmatpush2.msra.mxu0 0.0
    %448 = vmatprep.subr.mxu0 0.0
    %449 = vmatpush2.msra.mxu0 0.0
    %450 = vmatprep.subr.mxu0 0.0
    %451 = vmatpush2.msra.mxu0 0.0
    %452 = vmatprep.mubr.f32.mxu0 0.0
    %453 = vmatmul.mubr.f32.gmra.mxu0 %v383
    %v454 = vpop.f32.mrf.mxu0
    %v455 = vadd.f32 %v374, %v454
    %v456 = vpop.f32.mrf.mxu0
    %457 = vmatprep.mubr.f32.mxu0 0.0
    %458 = vmatmul.mubr.f32.gmra.mxu0 %v386
    %v459 = vpop.f32.mrf.mxu0
    %v460 = vadd.f32 %v379, %v459
    %v461 = vpop.f32.mrf.mxu0
    %462 = vdwg.mxu0
    %v463 = vmax.f32 %v455, 0.0
    %v464 = vmax.f32 %v460, 0.0
    %v465 = vand.u32 2147483647, %v455
    %v466 = vand.u32 2147483647, %v460
    %v467 = vsub.f32 0.0, %v465
    %v468 = vsub.f32 0.0, %v466
    %v469 = vmul.f32 %v467, 1.442695
    %v470 = vpow.pop %v469
    %v471 = vmul.f32 %v468, 1.442695
    %v472 = vpow.pop %v471
    %v473 = vadd.f32 %v470, 1.0
    %v474 = vlog2.pop %v473
    %v475 = vmul.f32 %v474, 0.6931472
    %v476 = vmul.f32 -0.5, %v470
    %v477 = vadd.f32 %v476, 1.0
    %v478 = vmul.f32 %v477, %v470
    %v479 = vand.u32 2147483647, %v470
    %vm480 = vcmp.lt.f32.partialorder %v479, 0.0004427343
    %v481 = vsel %vm480, %v478, %v475
    %v482 = vadd.f32 %v472, 1.0
    %v483 = vlog2.pop %v482
    %v484 = vmul.f32 %v483, 0.6931472
    %v485 = vmul.f32 -0.5, %v472
    %v486 = vadd.f32 %v485, 1.0
    %v487 = vmul.f32 %v486, %v472
    %v488 = vand.u32 2147483647, %v472
    %vm489 = vcmp.lt.f32.partialorder %v488, 0.0004427343
    %v490 = vsel %vm489, %v487, %v484
    %v491 = vadd.f32 %v463, %v481
    %v492 = vadd.f32 %v464, %v490
    %v493 = vld [vmem:[%s6] sm:$0xff]
    %v494 = vld [vmem:[%s6 + $0x8] sm:$0xff]
    %v496 = vsel %vm113, %v493, 0
    %v499 = vsel %vm113, %v494, 0
    %501 = vmatprep.subr.mxu0 0.0
    %502 = vmatpush1.msra.mxu0 0.0
    %503 = vmatprep.subr.mxu0 0.0
    %504 = vmatpush1.msra.mxu0 0.0
    %505 = vmatprep.subr.mxu0 0.0
    %506 = vmatpush1.msra.mxu0 0.0
    %507 = vmatprep.subr.mxu0 0.0
    %508 = vmatpush1.msra.mxu0 0.0
    %509 = vmatprep.subr.mxu0 0.0
    %510 = vmatpush1.msra.mxu0 0.0
    %511 = vmatprep.subr.mxu0 0.0
    %512 = vmatpush1.msra.mxu0 0.0
    %513 = vmatprep.subr.mxu0 0.0
    %514 = vmatpush1.msra.mxu0 0.0
    %515 = vmatprep.subr.mxu0 0.0
    %516 = vmatpush1.msra.mxu0 0.0
    %517 = vmatprep.subr.mxu0 0.0
    %518 = vmatpush1.msra.mxu0 0.0
    %519 = vmatprep.subr.mxu0 0.0
    %520 = vmatpush1.msra.mxu0 0.0
    %521 = vmatprep.subr.mxu0 0.0
    %522 = vmatpush1.msra.mxu0 0.0
    %523 = vmatprep.subr.mxu0 0.0
    %524 = vmatpush1.msra.mxu0 0.0
    %525 = vmatprep.subr.mxu0 0.0
    %526 = vmatpush1.msra.mxu0 0.0
    %527 = vmatprep.subr.mxu0 0.0
    %528 = vmatpush1.msra.mxu0 0.0
    %529 = vmatprep.subr.mxu0 0.0
    %530 = vmatpush1.msra.mxu0 %v492
    %531 = vmatprep.subr.mxu0 0.0
    %532 = vmatpush1.msra.mxu0 %v491
    %533 = vmatprep.subr.mxu0 0.0
    %534 = vmatpush2.msra.mxu0 0.0
    %535 = vmatprep.subr.mxu0 0.0
    %536 = vmatpush2.msra.mxu0 0.0
    %537 = vmatprep.subr.mxu0 0.0
    %538 = vmatpush2.msra.mxu0 0.0
    %539 = vmatprep.subr.mxu0 0.0
    %540 = vmatpush2.msra.mxu0 0.0
    %541 = vmatprep.subr.mxu0 0.0
    %542 = vmatpush2.msra.mxu0 0.0
    %543 = vmatprep.subr.mxu0 0.0
    %544 = vmatpush2.msra.mxu0 0.0
    %545 = vmatprep.subr.mxu0 0.0
    %546 = vmatpush2.msra.mxu0 0.0
    %547 = vmatprep.subr.mxu0 0.0
    %548 = vmatpush2.msra.mxu0 0.0
    %549 = vmatprep.subr.mxu0 0.0
    %550 = vmatpush2.msra.mxu0 0.0
    %551 = vmatprep.subr.mxu0 0.0
    %552 = vmatpush2.msra.mxu0 0.0
    %553 = vmatprep.subr.mxu0 0.0
    %554 = vmatpush2.msra.mxu0 0.0
    %555 = vmatprep.subr.mxu0 0.0
    %556 = vmatpush2.msra.mxu0 0.0
    %557 = vmatprep.subr.mxu0 0.0
    %558 = vmatpush2.msra.mxu0 0.0
    %559 = vmatprep.subr.mxu0 0.0
    %560 = vmatpush2.msra.mxu0 0.0
    %561 = vmatprep.subr.mxu0 0.0
    %562 = vmatpush2.msra.mxu0 0.0
    %563 = vmatprep.subr.mxu0 0.0
    %564 = vmatpush2.msra.mxu0 0.0
    %565 = vmatprep.mubr.f32.mxu0 0.0
    %566 = vmatmul.mubr.f32.gmra.mxu0 %v496
    %v567 = vpop.f32.mrf.mxu0
    %v568 = vadd.f32 0.0, %v567
    %v569 = vpop.f32.mrf.mxu0
    %570 = vmatprep.mubr.f32.mxu0 0.0
    %571 = vmatmul.mubr.f32.gmra.mxu0 %v499
    %v572 = vpop.f32.mrf.mxu0
    %v573 = vadd.f32 0.0, %v572
    %v574 = vpop.f32.mrf.mxu0
    %575 = vdwg.mxu0
    %576 = vst [vmem:[#allocation2] sm:$0xff] %v568
    %577 = vst [vmem:[#allocation2 + $0x8] sm:$0xff] %v573
    // Predicated region
    $region30: #{_rin_forward.1} parent=1 // pred_check
      _
    $region31: #{_rin_forward.1} parent=1 // pred_check_branch
      %579 = sbr.rel (0) target = $region33
    $region32: #{_rin_forward.1} parent=1 // pred_region
      %s581 = ssub.s32 256, 256
      %582 = vsyncadd [#allocation3], %s581
      %s583 = sshll.u32 [#allocation2], 4
      %s584 = int_to_ptr.vmem [resolvable:$true] %s583
      %589 = dma.vmem_to_hbm [thread:$0]  %s584, 256, %s7, [#allocation3], 128, 128, 8
    $region33: #{_rin_forward.1} parent=1 // pred_fallthru
      _
    // Predicated region
    $region34: #{_rin_forward.1} parent=1 // pred_check
      _
    $region35: #{_rin_forward.1} parent=1 // pred_check_branch
      %591 = sbr.rel (0) target = $region37
    $region36: #{_rin_forward.1} parent=1 // pred_region
      %592 = dma.done [#allocation3], 256
    $region37: #{_rin_forward.1} parent=1 // pred_fallthru
      _
    %593 = vsyncpa [#allocation3], 1

</llo_original>
